<compile_context>
chip_gen: v6e
topology: v6e:2x2x1
jax: 0.10.0
libtpu: 0.0.40
codegen_flags: <defaults>
</compile_context>

<pallas_src>
import functools

import jax
import jax.numpy as jnp
from jax import lax
from jax.experimental import pallas as pl
from jax.experimental.pallas import tpu as pltpu


def fam_kernel(xe_ref, w_ref, b_ref, o_ref, xcat_ref, *, W):
    # xe_ref  : (1, C, (H+2)*W + 2)  H-padded, flattened input (+1 halo elem each side)
    # w_ref   : (2C, 9C)  packed weights: rows [0,C) = conv3 taps, rows [C,2C) = conv1
    #           (non-zero only in the centre-tap column block)
    # b_ref   : (2C, 1)   packed biases [b3; b1]
    # o_ref   : (1, C, H*W)
    # xcat_ref: (9C, H*W) VMEM scratch holding the im2col matrix
    _, C, HW = o_ref.shape
    xe = xe_ref[0]                                         # (C, Lext)

    # Column index of every flattened output position (for the W-edge masks).
    col = lax.broadcasted_iota(jnp.int32, (1, HW), 1) % W
    left_ok = col != 0                                     # kx == 0 taps read col-1
    right_ok = col != (W - 1)                              # kx == 2 taps read col+1

    # Build the im2col matrix once: each 3x3 tap is a contiguous lane window of
    # the H-padded flattened image; W-edge wraparound is masked to zero.
    for ky in range(3):
        for kx in range(3):
            k = ky * 3 + kx
            s = xe[:, ky * W + kx: ky * W + kx + HW]       # (C, HW)
            if kx == 0:
                s = jnp.where(left_ok, s, 0.0)
            elif kx == 2:
                s = jnp.where(right_ok, s, 0.0)
            xcat_ref[k * C:(k + 1) * C, :] = s

    # Single fused MXU matmul for both branches, lane-dense (.., H*W) result.
    y = jnp.dot(w_ref[...], xcat_ref[...],
                preferred_element_type=jnp.float32)        # (2C, HW)
    y = jnp.maximum(y + b_ref[...], 0.0)                   # bias + ReLU in one VPU pass
    o_ref[0] = (y[:C, :] + y[C:, :]).astype(o_ref.dtype)   # relu(conv3) + relu(conv1)


def fam_block(x, w3, b3, w1, b1):
    """FAMBlock forward.

    x : (N, C, H, W) float32, NCHW (PyTorch layout).
    w3: (C, C, 3, 3) conv3 weight (OIHW), b3: (C,)
    w1: (C, C, 1, 1) conv1 weight (OIHW), b1: (C,)
    Returns (N, C, H, W).
    """
    N, C, H, W = x.shape
    Hp = H + 2
    HW = H * W
    Lext = Hp * W + 2

    # --- layout glue (plain JAX) ---
    # Pad H only; the W padding is handled in-kernel with edge masks so the
    # flattened spatial axis stays exactly H*W (lane-dense output, no strip).
    xh = jnp.pad(x, ((0, 0), (0, 0), (1, 1), (0, 0)))                 # (N, C, Hp, W)
    xe = jnp.pad(xh.reshape(N, C, Hp * W), ((0, 0), (0, 0), (1, 1)))  # (N, C, Lext)

    # Pack both convolutions into one weight matrix / bias vector.
    w3_cat = jnp.transpose(w3, (0, 2, 3, 1)).reshape(C, 9 * C)        # (Cout, 9*Cin)
    w1_cat = jnp.zeros((C, 9 * C), x.dtype).at[:, 4 * C:5 * C].set(w1[:, :, 0, 0])
    w_cat = jnp.concatenate([w3_cat, w1_cat], axis=0)                 # (2C, 9C)
    b_cat = jnp.concatenate([b3, b1]).reshape(2 * C, 1)               # (2C, 1)

    out_flat = pl.pallas_call(
        functools.partial(fam_kernel, W=W),
        out_shape=jax.ShapeDtypeStruct((N, C, HW), x.dtype),
        grid_spec=pltpu.PrefetchScalarGridSpec(
            num_scalar_prefetch=0,
            grid=(N,),
            in_specs=[
                pl.BlockSpec((1, C, Lext), lambda n: (n, 0, 0)),
                pl.BlockSpec((2 * C, 9 * C), lambda n: (0, 0)),
                pl.BlockSpec((2 * C, 1), lambda n: (0, 0)),
            ],
            out_specs=pl.BlockSpec((1, C, HW), lambda n: (n, 0, 0)),
            scratch_shapes=[pltpu.VMEM((9 * C, HW), jnp.float32)],
        ),
        compiler_params=pltpu.CompilerParams(
            dimension_semantics=("parallel",)),
    )(xe, w_cat, b_cat)

    return out_flat.reshape(N, C, H, W)   # free metadata reshape


def fam_block_reference(x, w3, b3, w1, b1):
    """Plain-JAX reference with the same semantics as the PyTorch module."""
    C = x.shape[1]
    y3 = lax.conv_general_dilated(
        x, w3, window_strides=(1, 1), padding=((1, 1), (1, 1)),
        dimension_numbers=("NCHW", "OIHW", "NCHW")) + b3.reshape(1, C, 1, 1)
    y1 = lax.conv_general_dilated(
        x, w1, window_strides=(1, 1), padding=((0, 0), (0, 0)),
        dimension_numbers=("NCHW", "OIHW", "NCHW")) + b1.reshape(1, C, 1, 1)
    return jnp.maximum(y3, 0.0) + jnp.maximum(y1, 0.0)


if __name__ == "__main__":
    N, C, H, W = 2, 4, 16, 16

    key = jax.random.PRNGKey(0)
    kx_, k3, kb3, k1, kb1 = jax.random.split(key, 5)

    # PyTorch-style NCHW input and OIHW conv parameters (as in nn.Conv2d).
    x = jax.random.normal(kx_, (N, C, H, W), dtype=jnp.float32)
    w3 = jax.random.normal(k3, (C, C, 3, 3), dtype=jnp.float32) * 0.1
    b3 = jax.random.normal(kb3, (C,), dtype=jnp.float32) * 0.1
    w1 = jax.random.normal(k1, (C, C, 1, 1), dtype=jnp.float32) * 0.1
    b1 = jax.random.normal(kb1, (C,), dtype=jnp.float32) * 0.1

    out = jax.block_until_ready(fam_block(x, w3, b3, w1, b1))
    ref = jax.block_until_ready(fam_block_reference(x, w3, b3, w1, b1))

    assert out.shape == (N, C, H, W)
    assert jnp.allclose(out, ref, atol=1e-4, rtol=1e-4), "mismatch vs reference"

    print("KERNEL_OK")
</pallas_src>

<mosaic_0001>
module attributes {stable_mosaic.version = 11 : i64} {
  func.func @fam_kernel(%arg0: i32, %arg1: memref<1x4x290xf32, #tpu.memory_space<vmem>>, %arg2: memref<8x36xf32, #tpu.memory_space<vmem>>, %arg3: memref<8x1xf32, #tpu.memory_space<vmem>>, %arg4: memref<1x4x256xf32, #tpu.memory_space<vmem>>, %arg5: memref<36x256xf32, #tpu.memory_space<vmem>>) attributes {dimension_semantics = [#tpu.dimension_semantics<parallel>], iteration_bounds = array<i64: 2>, scalar_prefetch = 0 : i64, scratch_operands = 1 : i64, tpu.core_type = #tpu.core_type<tc>, window_params = [{transform_indices = @transform_0, window_bounds = array<i64: 1, 4, 290>}, {pipeline_mode = #tpu.pipeline_mode<synchronous>, transform_indices = @transform_1, window_bounds = array<i64: 8, 36>}, {pipeline_mode = #tpu.pipeline_mode<synchronous>, transform_indices = @transform_2, window_bounds = array<i64: 8, 1>}, {transform_indices = @transform_3, window_bounds = array<i64: 1, 4, 256>}]} {
    %c0 = arith.constant 0 : index
    %c0_0 = arith.constant 0 : index
    %c0_1 = arith.constant 0 : index
    %0 = vector.load %arg1[%c0, %c0_0, %c0_1] : memref<1x4x290xf32, #tpu.memory_space<vmem>>, vector<1x4x290xf32>
    %1 = vector.shape_cast %0 : vector<1x4x290xf32> to vector<4x290xf32>
    %2 = tpu.iota {dimensions = array<i32: 1>} : vector<1x256xi32>
    %c16_i32 = arith.constant 16 : i32
    %c0_i32 = arith.constant 0 : i32
    %3 = arith.cmpi eq, %c16_i32, %c0_i32 : i32
    %c1_i32 = arith.constant 1 : i32
    %4 = arith.select %3, %c1_i32, %c16_i32 : i32
    %5 = vector.broadcast %4 : i32 to vector<1x256xi32>
    %6 = arith.remsi %2, %5 : vector<1x256xi32>
    %c0_i32_2 = arith.constant 0 : i32
    %7 = vector.broadcast %c0_i32_2 : i32 to vector<1x256xi32>
    %8 = arith.cmpi ne, %6, %7 : vector<1x256xi32>
    %c0_i32_3 = arith.constant 0 : i32
    %9 = vector.broadcast %c0_i32_3 : i32 to vector<1x256xi32>
    %10 = arith.cmpi slt, %6, %9 : vector<1x256xi32>
    %c0_i32_4 = arith.constant 0 : i32
    %11 = arith.cmpi slt, %4, %c0_i32_4 : i32
    %12 = vector.broadcast %11 : i1 to vector<1x256xi1>
    %13 = vector.broadcast %12 : vector<1x256xi1> to vector<1x256xi1>
    %14 = arith.xori %10, %13 : vector<1x256xi1>
    %15 = arith.andi %14, %8 : vector<1x256xi1>
    %16 = vector.broadcast %4 : i32 to vector<1x256xi32>
    %17 = arith.addi %6, %16 : vector<1x256xi32>
    %18 = arith.select %15, %17, %6 : vector<1x256xi1>, vector<1x256xi32>
    %c0_i32_5 = arith.constant 0 : i32
    %19 = vector.broadcast %c0_i32_5 : i32 to vector<1x256xi32>
    %20 = arith.cmpi ne, %18, %19 : vector<1x256xi32>
    %c15_i32 = arith.constant 15 : i32
    %21 = vector.broadcast %c15_i32 : i32 to vector<1x256xi32>
    %22 = arith.cmpi ne, %18, %21 : vector<1x256xi32>
    %23 = vector.extract_strided_slice %1 {offsets = [0, 0], sizes = [4, 256], strides = [1, 1]} : vector<4x290xf32> to vector<4x256xf32>
    %cst = arith.constant 0.000000e+00 : f32
    %24 = vector.shape_cast %20 : vector<1x256xi1> to vector<1x256xi1>
    %25 = vector.broadcast %24 : vector<1x256xi1> to vector<4x256xi1>
    %26 = vector.broadcast %cst : f32 to vector<4x256xf32>
    %27 = arith.select %25, %23, %26 : vector<4x256xi1>, vector<4x256xf32>
    %c0_6 = arith.constant 0 : index
    %c0_7 = arith.constant 0 : index
    %28 = vector.load %arg5[%c0_6, %c0_7] : memref<36x256xf32, #tpu.memory_space<vmem>>, vector<4x256xf32>
    tpu.vector_store %arg5[%c0_6, %c0_7], %27 {strides = array<i32>} : memref<36x256xf32, #tpu.memory_space<vmem>>, vector<4x256xf32>,
    %29 = vector.extract_strided_slice %1 {offsets = [0, 1], sizes = [4, 256], strides = [1, 1]} : vector<4x290xf32> to vector<4x256xf32>
    %c4 = arith.constant 4 : index
    %c0_8 = arith.constant 0 : index
    %30 = vector.load %arg5[%c4, %c0_8] : memref<36x256xf32, #tpu.memory_space<vmem>>, vector<4x256xf32>
    tpu.vector_store %arg5[%c4, %c0_8], %29 {strides = array<i32>} : memref<36x256xf32, #tpu.memory_space<vmem>>, vector<4x256xf32>,
    %31 = vector.extract_strided_slice %1 {offsets = [0, 2], sizes = [4, 256], strides = [1, 1]} : vector<4x290xf32> to vector<4x256xf32>
    %cst_9 = arith.constant 0.000000e+00 : f32
    %32 = vector.shape_cast %22 : vector<1x256xi1> to vector<1x256xi1>
    %33 = vector.broadcast %32 : vector<1x256xi1> to vector<4x256xi1>
    %34 = vector.broadcast %cst_9 : f32 to vector<4x256xf32>
    %35 = arith.select %33, %31, %34 : vector<4x256xi1>, vector<4x256xf32>
    %c8 = arith.constant 8 : index
    %c0_10 = arith.constant 0 : index
    %36 = vector.load %arg5[%c8, %c0_10] : memref<36x256xf32, #tpu.memory_space<vmem>>, vector<4x256xf32>
    tpu.vector_store %arg5[%c8, %c0_10], %35 {strides = array<i32>} : memref<36x256xf32, #tpu.memory_space<vmem>>, vector<4x256xf32>,
    %37 = vector.extract_strided_slice %1 {offsets = [0, 16], sizes = [4, 256], strides = [1, 1]} : vector<4x290xf32> to vector<4x256xf32>
    %cst_11 = arith.constant 0.000000e+00 : f32
    %38 = vector.shape_cast %20 : vector<1x256xi1> to vector<1x256xi1>
    %39 = vector.broadcast %38 : vector<1x256xi1> to vector<4x256xi1>
    %40 = vector.broadcast %cst_11 : f32 to vector<4x256xf32>
    %41 = arith.select %39, %37, %40 : vector<4x256xi1>, vector<4x256xf32>
    %c12 = arith.constant 12 : index
    %c0_12 = arith.constant 0 : index
    %42 = vector.load %arg5[%c12, %c0_12] : memref<36x256xf32, #tpu.memory_space<vmem>>, vector<4x256xf32>
    tpu.vector_store %arg5[%c12, %c0_12], %41 {strides = array<i32>} : memref<36x256xf32, #tpu.memory_space<vmem>>, vector<4x256xf32>,
    %43 = vector.extract_strided_slice %1 {offsets = [0, 17], sizes = [4, 256], strides = [1, 1]} : vector<4x290xf32> to vector<4x256xf32>
    %c16 = arith.constant 16 : index
    %c0_13 = arith.constant 0 : index
    %44 = vector.load %arg5[%c16, %c0_13] : memref<36x256xf32, #tpu.memory_space<vmem>>, vector<4x256xf32>
    tpu.vector_store %arg5[%c16, %c0_13], %43 {strides = array<i32>} : memref<36x256xf32, #tpu.memory_space<vmem>>, vector<4x256xf32>,
    %45 = vector.extract_strided_slice %1 {offsets = [0, 18], sizes = [4, 256], strides = [1, 1]} : vector<4x290xf32> to vector<4x256xf32>
    %cst_14 = arith.constant 0.000000e+00 : f32
    %46 = vector.shape_cast %22 : vector<1x256xi1> to vector<1x256xi1>
    %47 = vector.broadcast %46 : vector<1x256xi1> to vector<4x256xi1>
    %48 = vector.broadcast %cst_14 : f32 to vector<4x256xf32>
    %49 = arith.select %47, %45, %48 : vector<4x256xi1>, vector<4x256xf32>
    %c20 = arith.constant 20 : index
    %c0_15 = arith.constant 0 : index
    %50 = vector.load %arg5[%c20, %c0_15] : memref<36x256xf32, #tpu.memory_space<vmem>>, vector<4x256xf32>
    tpu.vector_store %arg5[%c20, %c0_15], %49 {strides = array<i32>} : memref<36x256xf32, #tpu.memory_space<vmem>>, vector<4x256xf32>,
    %51 = vector.extract_strided_slice %1 {offsets = [0, 32], sizes = [4, 256], strides = [1, 1]} : vector<4x290xf32> to vector<4x256xf32>
    %cst_16 = arith.constant 0.000000e+00 : f32
    %52 = vector.shape_cast %20 : vector<1x256xi1> to vector<1x256xi1>
    %53 = vector.broadcast %52 : vector<1x256xi1> to vector<4x256xi1>
    %54 = vector.broadcast %cst_16 : f32 to vector<4x256xf32>
    %55 = arith.select %53, %51, %54 : vector<4x256xi1>, vector<4x256xf32>
    %c24 = arith.constant 24 : index
    %c0_17 = arith.constant 0 : index
    %56 = vector.load %arg5[%c24, %c0_17] : memref<36x256xf32, #tpu.memory_space<vmem>>, vector<4x256xf32>
    tpu.vector_store %arg5[%c24, %c0_17], %55 {strides = array<i32>} : memref<36x256xf32, #tpu.memory_space<vmem>>, vector<4x256xf32>,
    %57 = vector.extract_strided_slice %1 {offsets = [0, 33], sizes = [4, 256], strides = [1, 1]} : vector<4x290xf32> to vector<4x256xf32>
    %c28 = arith.constant 28 : index
    %c0_18 = arith.constant 0 : index
    %58 = vector.load %arg5[%c28, %c0_18] : memref<36x256xf32, #tpu.memory_space<vmem>>, vector<4x256xf32>
    tpu.vector_store %arg5[%c28, %c0_18], %57 {strides = array<i32>} : memref<36x256xf32, #tpu.memory_space<vmem>>, vector<4x256xf32>,
    %59 = vector.extract_strided_slice %1 {offsets = [0, 34], sizes = [4, 256], strides = [1, 1]} : vector<4x290xf32> to vector<4x256xf32>
    %cst_19 = arith.constant 0.000000e+00 : f32
    %60 = vector.shape_cast %22 : vector<1x256xi1> to vector<1x256xi1>
    %61 = vector.broadcast %60 : vector<1x256xi1> to vector<4x256xi1>
    %62 = vector.broadcast %cst_19 : f32 to vector<4x256xf32>
    %63 = arith.select %61, %59, %62 : vector<4x256xi1>, vector<4x256xf32>
    %c32 = arith.constant 32 : index
    %c0_20 = arith.constant 0 : index
    %64 = vector.load %arg5[%c32, %c0_20] : memref<36x256xf32, #tpu.memory_space<vmem>>, vector<4x256xf32>
    tpu.vector_store %arg5[%c32, %c0_20], %63 {strides = array<i32>} : memref<36x256xf32, #tpu.memory_space<vmem>>, vector<4x256xf32>,
    %c0_21 = arith.constant 0 : index
    %c0_22 = arith.constant 0 : index
    %65 = vector.load %arg2[%c0_21, %c0_22] : memref<8x36xf32, #tpu.memory_space<vmem>>, vector<8x36xf32>
    %c0_23 = arith.constant 0 : index
    %c0_24 = arith.constant 0 : index
    %66 = vector.load %arg5[%c0_23, %c0_24] : memref<36x256xf32, #tpu.memory_space<vmem>>, vector<36x256xf32>
    %cst_25 = arith.constant dense<0.000000e+00> : vector<8x256xf32>
    %67 = tpu.matmul %65, %66, %cst_25 {dimension_numbers = #tpu.dot_dimension_numbers<[1], [0], [0], [1], [0, 0, 1, 1], [], []>} : vector<8x36xf32>, vector<36x256xf32>, vector<8x256xf32> -> vector<8x256xf32>
    %c0_26 = arith.constant 0 : index
    %c0_27 = arith.constant 0 : index
    %68 = vector.load %arg3[%c0_26, %c0_27] : memref<8x1xf32, #tpu.memory_space<vmem>>, vector<8x1xf32>
    %69 = vector.broadcast %68 : vector<8x1xf32> to vector<8x256xf32>
    %70 = arith.addf %67, %69 : vector<8x256xf32>
    %cst_28 = arith.constant 0.000000e+00 : f32
    %71 = vector.broadcast %cst_28 : f32 to vector<8x256xf32>
    %72 = arith.maximumf %70, %71 : vector<8x256xf32>
    %73 = vector.extract_strided_slice %72 {offsets = [0, 0], sizes = [4, 256], strides = [1, 1]} : vector<8x256xf32> to vector<4x256xf32>
    %74 = vector.extract_strided_slice %72 {offsets = [4, 0], sizes = [4, 256], strides = [1, 1]} : vector<8x256xf32> to vector<4x256xf32>
    %75 = arith.addf %73, %74 : vector<4x256xf32>
    %c0_29 = arith.constant 0 : index
    %c0_30 = arith.constant 0 : index
    %c0_31 = arith.constant 0 : index
    %76 = vector.load %arg4[%c0_29, %c0_30, %c0_31] : memref<1x4x256xf32, #tpu.memory_space<vmem>>, vector<1x4x256xf32>
    %77 = vector.shape_cast %76 : vector<1x4x256xf32> to vector<4x256xf32>
    %78 = vector.shape_cast %75 : vector<4x256xf32> to vector<1x4x256xf32>
    tpu.vector_store %arg4[%c0_29, %c0_30, %c0_31], %78 {strides = array<i32>} : memref<1x4x256xf32, #tpu.memory_space<vmem>>, vector<1x4x256xf32>,
    return
  }
  func.func @transform_0(%arg0: i32) -> (i32, i32, i32) {
    %c0_i32 = arith.constant 0 : i32
    %c0_i32_0 = arith.constant 0 : i32
    %c0_i32_1 = arith.constant 0 : i32
    return %arg0, %c0_i32, %c0_i32_0 : i32, i32, i32
  }
  func.func @transform_1(%arg0: i32) -> (i32, i32) {
    %c0_i32 = arith.constant 0 : i32
    %c0_i32_0 = arith.constant 0 : i32
    %c0_i32_1 = arith.constant 0 : i32
    return %c0_i32, %c0_i32_0 : i32, i32
  }
  func.func @transform_2(%arg0: i32) -> (i32, i32) {
    %c0_i32 = arith.constant 0 : i32
    %c0_i32_0 = arith.constant 0 : i32
    %c0_i32_1 = arith.constant 0 : i32
    return %c0_i32, %c0_i32_0 : i32, i32
  }
  func.func @transform_3(%arg0: i32) -> (i32, i32, i32) {
    %c0_i32 = arith.constant 0 : i32
    %c0_i32_0 = arith.constant 0 : i32
    %c0_i32_1 = arith.constant 0 : i32
    return %arg0, %c0_i32, %c0_i32_0 : i32, i32, i32
  }
}

</mosaic_0001>

<llo_original>
// kernel: tpu_custom_call.1
$region0: #{tpu_custom_call.1}
  #allocation0 [shape = 'u32[]', space=smem, size = 0x4, offset = 0x4, fixed_abs, tag = 'smem constant byte address 0x4 - core index']
  #allocation1 [shape = 'u32[144,128]{1,0:T(1,128)}', space=vmem, size = 0x12000, scoped, tag = 'internal scratch']
  #allocation2 [shape = 'f32[36,256]{1,0:T(8,128)}', space=vmem, size = 0xa000, scoped, tag = 'scratch operand']
  %s0 = inlined_call_operand.hbm [shape: f32[2,4,290], index: 0, kind: input, shape index: {}]
  %s1 = inlined_call_operand.vmem [shape: f32[8,36], index: 1, kind: input, shape index: {}]
  %s2 = inlined_call_operand.vmem [shape: f32[8,1], index: 2, kind: input, shape index: {}]
  %s3 = inlined_call_operand.hbm [shape: f32[2,4,256], index: 3, kind: output, shape index: {}]
  %s4 = sld [smem:[#allocation0]]
  $region49: #{tpu_custom_call.1} parent=0
    _
  %s6 = ssub.s32 1, %s4
  %s7 = scalar_select 0, %s6, %s4
  $region1: #{tpu_custom_call.1} parent=0
    #allocation3 [shape = 'u8[12288]{0}', space=vmem, size = 0x3000, scoped, tag = 'input window, operand 0']
    #allocation4 [shape = 's32[2]{0}', space=sflag, size = 0x8, scoped, tag = 'scoped memory for tpu_custom_call.1']
    #allocation5 [shape = 's32[2]{0}', space=sflag, size = 0x8, scoped, tag = 'scoped memory for tpu_custom_call.1']
    #allocation6 [shape = 'u8[8192]{0}', space=vmem, size = 0x2000, scoped, tag = 'output window, operand 0']
    %8 = vsyncpa [#allocation4], 0
    %s9 = scalar_lea.sflag [#allocation4], 1
    %10 = vsyncpa %s9, 0
    %11 = vsyncpa [#allocation5], 0
    %s12 = scalar_lea.sflag [#allocation5], 1
    %13 = vsyncpa %s12, 0
    loop: start=0, step=1, limit=4
    $region2: #{tpu_custom_call.1} parent=1 // loop_pre_header
      _
    $region3: #{tpu_custom_call.1} parent=1 // loop_header
      %s15 = sphi 0, %s19
      %p16 = scmp.ge.s32.totalorder %s15, 4
      %s25 = sphi 0, %s27
      %s28 = sphi 0, %s25
      %s29 = sphi 0, %s28
      %s45 = sphi 0, %s29
      %s49 = sphi 0, %s49
      %s51 = sphi 0, %s49
      %s52 = sphi 0, %s51
      %s66 = sphi 0, %s52
      %s70 = sphi 0, %s70
      %s72 = sphi 0, %s70
      %s73 = sphi 0, %s72
      %s87 = sphi 0, %s73
      %s93 = sphi 0, %s95
      %s96 = sphi 0, %s93
      %s97 = sphi 0, %s96
      %s113 = sphi 0, %s97
    $region4: #{tpu_custom_call.1} parent=1 // loop_header_branch
      %18 = sbr.rel (%p16) target = $region8
    $region5: #{tpu_custom_call.1} parent=1 // loop_body
      %s20 = ssub.s32 %s15, 1
      %s21 = ssub.s32 %s15, 2
      %s22 = sadd.s32 %s15, 1
      %s23 = ssub.s32 %s15, %s22
      %p24 = scmp.eq.s32.totalorder %s23, 0
      %s26 = sadd.s32 %s25, 1
      %s27 = scalar_select %p24, %s25, %s26
      %p30 = pneg %p24
      %p31 = scmp.eq.s32.totalorder %s15, 1
      %p32 = por %p30, %p31
      %p33 = scmp.ne.s32.totalorder %s25, %s28
      %p34 = scmp.eq.s32.totalorder %s15, 0
      %p35 = por %p33, %p34
      %p36 = scmp.ne.s32.totalorder %s25, %s28
      %p37 = scmp.eq.s32.totalorder %s20, 1
      %p38 = por %p36, %p37
      %p39 = scmp.ne.s32.totalorder %s28, %s29
      %p40 = scmp.eq.s32.totalorder %s20, 0
      %p41 = por %p39, %p40
      %p42 = scmp.ne.s32.totalorder %s28, %s29
      %p43 = scmp.eq.s32.totalorder %s21, 1
      %p44 = por %p42, %p43
      %p46 = scmp.ne.s32.totalorder %s29, %s45
      %p47 = scmp.eq.s32.totalorder %s21, 0
      %p48 = por %p46, %p47
      %s50 = sadd.s32 %s49, 1
      %p53 = scmp.eq.s32.totalorder %s15, 1
      %p54 = scmp.ne.s32.totalorder %s49, %s51
      %p55 = scmp.eq.s32.totalorder %s15, 0
      %p56 = por %p54, %p55
      %p57 = scmp.ne.s32.totalorder %s49, %s51
      %p58 = scmp.eq.s32.totalorder %s20, 1
      %p59 = por %p57, %p58
      %p60 = scmp.ne.s32.totalorder %s51, %s52
      %p61 = scmp.eq.s32.totalorder %s20, 0
      %p62 = por %p60, %p61
      %p63 = scmp.ne.s32.totalorder %s51, %s52
      %p64 = scmp.eq.s32.totalorder %s21, 1
      %p65 = por %p63, %p64
      %p67 = scmp.ne.s32.totalorder %s52, %s66
      %p68 = scmp.eq.s32.totalorder %s21, 0
      %p69 = por %p67, %p68
      %s71 = sadd.s32 %s70, 1
      %p74 = scmp.eq.s32.totalorder %s15, 1
      %p75 = scmp.ne.s32.totalorder %s70, %s72
      %p76 = scmp.eq.s32.totalorder %s15, 0
      %p77 = por %p75, %p76
      %p78 = scmp.ne.s32.totalorder %s70, %s72
      %p79 = scmp.eq.s32.totalorder %s20, 1
      %p80 = por %p78, %p79
      %p81 = scmp.ne.s32.totalorder %s72, %s73
      %p82 = scmp.eq.s32.totalorder %s20, 0
      %p83 = por %p81, %p82
      %p84 = scmp.ne.s32.totalorder %s72, %s73
      %p85 = scmp.eq.s32.totalorder %s21, 1
      %p86 = por %p84, %p85
      %p88 = scmp.ne.s32.totalorder %s73, %s87
      %p89 = scmp.eq.s32.totalorder %s21, 0
      %p90 = por %p88, %p89
      %s91 = ssub.s32 %s15, %s22
      %p92 = scmp.eq.s32.totalorder %s91, 0
      %s94 = sadd.s32 %s93, 1
      %s95 = scalar_select %p92, %s93, %s94
      %p98 = pneg %p92
      %p99 = scmp.eq.s32.totalorder %s15, 1
      %p100 = por %p98, %p99
      %p101 = scmp.ne.s32.totalorder %s93, %s96
      %p102 = scmp.eq.s32.totalorder %s15, 0
      %p103 = por %p101, %p102
      %p104 = scmp.ne.s32.totalorder %s93, %s96
      %p105 = scmp.eq.s32.totalorder %s20, 1
      %p106 = por %p104, %p105
      %p107 = scmp.ne.s32.totalorder %s96, %s97
      %p108 = scmp.eq.s32.totalorder %s20, 0
      %p109 = por %p107, %p108
      %p110 = scmp.ne.s32.totalorder %s96, %s97
      %p111 = scmp.eq.s32.totalorder %s21, 1
      %p112 = por %p110, %p111
      %p114 = scmp.ne.s32.totalorder %s97, %s113
      %p115 = scmp.eq.s32.totalorder %s21, 0
      %p116 = por %p114, %p115
      %p117 = scmp.le.s32.totalorder 1, %s15
      %p118 = scmp.lt.s32.totalorder %s15, 3
      %p119 = pnand %p117, %p118
      %p120 = pneg %p119
      // Predicated region
      $region9: #{tpu_custom_call.1} parent=5 // pred_check
        _
      $region10: #{tpu_custom_call.1} parent=5 // pred_check_branch
        %122 = sbr.rel (%p119) target = $region12
      $region11: #{tpu_custom_call.1} parent=5 // pred_region
        %s123 = ssub.s32 %s15, 1
        // Predicated region
        $region13: #{tpu_custom_call.1} parent=11 // pred_check
          %p124 = pneg %p62
        $region14: #{tpu_custom_call.1} parent=11 // pred_check_branch
          %126 = sbr.rel (%p124) target = $region16
        $region15: #{tpu_custom_call.1} parent=11 // pred_region
          _
        $region16: #{tpu_custom_call.1} parent=11 // pred_fallthru
          _
        // Predicated region
        $region17: #{tpu_custom_call.1} parent=11 // pred_check
          %p127 = pneg %p83
        $region18: #{tpu_custom_call.1} parent=11 // pred_check_branch
          %129 = sbr.rel (%p127) target = $region20
        $region19: #{tpu_custom_call.1} parent=11 // pred_region
          _
        $region20: #{tpu_custom_call.1} parent=11 // pred_fallthru
          _
      $region12: #{tpu_custom_call.1} parent=5 // pred_fallthru
        _
      %p130 = scmp.lt.s32.totalorder %s15, 2
      // Predicated region
      $region21: #{tpu_custom_call.1} parent=5 // pred_check
        %p131 = pneg %p130
      $region22: #{tpu_custom_call.1} parent=5 // pred_check_branch
        %133 = sbr.rel (%p131) target = $region24
      $region23: #{tpu_custom_call.1} parent=5 // pred_region
        // Predicated region
        $region25: #{tpu_custom_call.1} parent=23 // pred_check
          %p134 = pneg %p35
        $region26: #{tpu_custom_call.1} parent=23 // pred_check_branch
          %136 = sbr.rel (%p134) target = $region28
        $region27: #{tpu_custom_call.1} parent=23 // pred_region
          %s137 = sand.u32 %s25, 1
          %s138 = scalar_lea.sflag [#allocation4], %s137
          %s139 = sand.u32 %s25, 1
          %s140 = smul.addr %s139, 12
          %s141 = scalar_lea.vmem [#allocation3], %s140
          %s143 = ssub.s32 192, 192
          %144 = vsyncadd %s138, %s143
          %s145 = smul.addr %s15, 3
          %s146 = smul.addr %s145, 64
          %s147 = scalar_lea.hbm %s0, %s146
          %s149 = sshll.u32 %s141, 4
          %s150 = int_to_ptr.vmem [resolvable:$true] %s149
          %152 = dma.hbm_to_vmem [thread:$0]  %s147, 192, %s150, %s138
        $region28: #{tpu_custom_call.1} parent=23 // pred_fallthru
          _
      $region24: #{tpu_custom_call.1} parent=5 // pred_fallthru
        _
      %p153 = scmp.le.s32.totalorder 1, %s15
      %p154 = scmp.lt.s32.totalorder %s15, 3
      %p155 = pnand %p153, %p154
      %p156 = pneg %p155
      // Predicated region
      $region29: #{tpu_custom_call.1} parent=5 // pred_check
        _
      $region30: #{tpu_custom_call.1} parent=5 // pred_check_branch
        %158 = sbr.rel (%p155) target = $region32
      $region31: #{tpu_custom_call.1} parent=5 // pred_region
        %s159 = ssub.s32 %s15, 1
        %s160 = sand.u32 %s28, 1
        %s161 = scalar_lea.sflag [#allocation4], %s160
        %s162 = sand.u32 %s28, 1
        %s163 = smul.addr %s162, 12
        %s164 = scalar_lea.vmem [#allocation3], %s163
        // Predicated region
        $region33: #{tpu_custom_call.1} parent=31 // pred_check
          %p165 = pneg %p41
        $region34: #{tpu_custom_call.1} parent=31 // pred_check_branch
          %167 = sbr.rel (%p165) target = $region36
        $region35: #{tpu_custom_call.1} parent=31 // pred_region
          %168 = dma.done %s161, 192
        $region36: #{tpu_custom_call.1} parent=31 // pred_fallthru
          _
        %s169 = sand.u32 %s28, 1
        %s170 = scalar_lea.sflag [#allocation4], %s169
        %s171 = sand.u32 %s28, 1
        %s172 = smul.addr %s171, 12
        %s173 = scalar_lea.vmem [#allocation3], %s172
        %p174 = pneg %p41
        %p175 = pneg %p38
        %p176 = pneg %p62
        %p177 = pneg %p59
        %p178 = pneg %p83
        %p179 = pneg %p80
        %p180 = pneg %p109
        %p181 = pneg %p106
        %s182 = sand.u32 %s96, 1
        %s183 = scalar_lea.sflag [#allocation5], %s182
        %s184 = sand.u32 %s96, 1
        %s185 = smul.addr %s184, 8
        %s186 = scalar_lea.vmem [#allocation6], %s185
        %v187 = vld [vmem:[%s164] sm:$0xff]
        %v188 = vld [vmem:[%s164 + $0x8] sm:$0xf]
        %v189 = vlaneseq
        %v190 = vand.u32 %v189, 127
        %v191 = vadd.s32 %v190, 128
        %vm192 = vcmp.lt.s32.totalorder %v190, 0
        %v193 = vsub.s32 0, %v190
        %v194 = vsel %vm192, %v193, %v190
        %v195 = vshrl.u32 %v194, 4
        %v196 = vand.u32 %v194, 15
        %v197 = vsub.s32 0, %v196
        %v198 = vsel %vm192, %v197, %v196
        %vm199 = vcmp.lt.s32.totalorder %v191, 0
        %v200 = vsub.s32 0, %v191
        %v201 = vsel %vm199, %v200, %v191
        %v202 = vshrl.u32 %v201, 4
        %v203 = vand.u32 %v201, 15
        %v204 = vsub.s32 0, %v203
        %v205 = vsel %vm199, %v204, %v203
        %vm206 = vcmp.ne.s32.totalorder %v198, 0
        %vm207 = vcmp.ne.s32.totalorder %v205, 0
        %vm208 = vcmp.lt.s32.totalorder %v198, 0
        %vm209 = vcmp.lt.s32.totalorder %v205, 0
        %vm210 = vmand %vm208, %vm206
        %vm211 = vmand %vm209, %vm207
        %v212 = vadd.s32 %v198, 16
        %v213 = vadd.s32 %v205, 16
        %v214 = vsel %vm210, %v212, %v198
        %v215 = vsel %vm211, %v213, %v205
        %vm216 = vcmp.ne.s32.totalorder %v214, 0
        %vm217 = vcmp.ne.s32.totalorder %v215, 0
        %vm218 = vcmp.ne.s32.totalorder %v214, 15
        %vm219 = vcmp.ne.s32.totalorder %v215, 15
        %v220 = vsel %vm216, 1, 0
        %v221 = vsel %vm217, 1, 0
        %vm222 = vcmp.eq.s32.totalorder %v220, 1
        %vm223 = vcmp.eq.s32.totalorder %v221, 1
        %v225 = vcombine.high %v187, %v187
        %v227 = vsel %vm222, %v187, 0.0
        %v228 = vsel %vm223, %v225, 0.0
        %229 = vst [vmem:[#allocation2] sm:$0xf] %v227
        %230 = vst [vmem:[#allocation2 + $0x8] sm:$0xf] %v228
        %v232 = vcombine.low %v187, %v187
        %v233 = vcombine.low %v188, %v188
        %234 = vrot.lane.b32.xlu0 %v232, 127
        %v235 = vpop.permute.xlu0 %234
        %236 = vrot.lane.b32.xlu0 %v187, 127
        %v237 = vpop.permute.xlu0 %236
        %238 = vrot.lane.b32.xlu0 %v233, 127
        %v239 = vpop.permute.xlu0 %238
        %vm240 = vcmask 1039360
        %v241 = vsel %vm240, %v235, %v237
        %v242 = vsel %vm240, %v237, %v239
        %245 = vst [vmem:[#allocation2] sm:$0xf0] %v241
        %246 = vst [vmem:[#allocation2 + $0x8] sm:$0xf0] %v242
        %v247 = vsel %vm218, 1, 0
        %v248 = vsel %vm219, 1, 0
        %vm249 = vcmp.eq.s32.totalorder %v247, 1
        %vm250 = vcmp.eq.s32.totalorder %v248, 1
        %251 = vrot.lane.b32.xlu0 %v187, 126
        %v252 = vpop.permute.xlu0 %251
        %253 = vrot.lane.b32.xlu0 %v225, 126
        %v254 = vpop.permute.xlu0 %253
        %255 = vrot.lane.b32.xlu0 %v188, 126
        %v256 = vpop.permute.xlu0 %255
        %vm257 = vcmask 1031168
        %v258 = vsel %vm257, %v252, %v254
        %v259 = vsel %vm257, %v254, %v256
        %v262 = vsel %vm249, %v258, 0.0
        %v263 = vsel %vm250, %v259, 0.0
        %264 = vst [vmem:[#allocation2 + $0x10] sm:$0xf] %v262
        %265 = vst [vmem:[#allocation2 + $0x18] sm:$0xf] %v263
        %266 = vrot.lane.b32.xlu0 %v187, 112
        %v267 = vpop.permute.xlu0 %266
        %268 = vrot.lane.b32.xlu0 %v225, 112
        %v269 = vpop.permute.xlu0 %268
        %270 = vrot.lane.b32.xlu0 %v188, 112
        %v271 = vpop.permute.xlu0 %270
        %vm272 = vcmask 916480
        %v273 = vsel %vm272, %v267, %v269
        %v274 = vsel %vm272, %v269, %v271
        %v277 = vsel %vm222, %v273, 0.0
        %v278 = vsel %vm223, %v274, 0.0
        %v281 = vrot.slane %v277, 4
        %v282 = vrot.slane %v278, 4
        %285 = vst [vmem:[#allocation2 + $0x10] sm:$0xf0] %v281
        %286 = vst [vmem:[#allocation2 + $0x18] sm:$0xf0] %v282
        %287 = vrot.lane.b32.xlu0 %v187, 111
        %v288 = vpop.permute.xlu0 %287
        %289 = vrot.lane.b32.xlu0 %v225, 111
        %v290 = vpop.permute.xlu0 %289
        %291 = vrot.lane.b32.xlu0 %v188, 111
        %v292 = vpop.permute.xlu0 %291
        %vm293 = vcmask 908288
        %v294 = vsel %vm293, %v288, %v290
        %v295 = vsel %vm293, %v290, %v292
        %298 = vst [vmem:[#allocation2 + $0x20] sm:$0xf] %v294
        %299 = vst [vmem:[#allocation2 + $0x28] sm:$0xf] %v295
        %300 = vrot.lane.b32.xlu0 %v187, 110
        %v301 = vpop.permute.xlu0 %300
        %302 = vrot.lane.b32.xlu0 %v225, 110
        %v303 = vpop.permute.xlu0 %302
        %304 = vrot.lane.b32.xlu0 %v188, 110
        %v305 = vpop.permute.xlu0 %304
        %vm306 = vcmask 900096
        %v307 = vsel %vm306, %v301, %v303
        %v308 = vsel %vm306, %v303, %v305
        %v311 = vsel %vm249, %v307, 0.0
        %v312 = vsel %vm250, %v308, 0.0
        %v315 = vrot.slane %v311, 4
        %v316 = vrot.slane %v312, 4
        %319 = vst [vmem:[#allocation2 + $0x20] sm:$0xf0] %v315
        %320 = vst [vmem:[#allocation2 + $0x28] sm:$0xf0] %v316
        %321 = vrot.lane.b32.xlu0 %v187, 96
        %v322 = vpop.permute.xlu0 %321
        %323 = vrot.lane.b32.xlu0 %v225, 96
        %v324 = vpop.permute.xlu0 %323
        %325 = vrot.lane.b32.xlu0 %v188, 96
        %v326 = vpop.permute.xlu0 %325
        %vm327 = vcmask 785408
        %v328 = vsel %vm327, %v322, %v324
        %v329 = vsel %vm327, %v324, %v326
        %v332 = vsel %vm222, %v328, 0.0
        %v333 = vsel %vm223, %v329, 0.0
        %334 = vst [vmem:[#allocation2 + $0x30] sm:$0xf] %v332
        %335 = vst [vmem:[#allocation2 + $0x38] sm:$0xf] %v333
        %336 = vrot.lane.b32.xlu0 %v232, 95
        %v337 = vpop.permute.xlu0 %336
        %338 = vrot.lane.b32.xlu0 %v187, 95
        %v339 = vpop.permute.xlu0 %338
        %340 = vrot.lane.b32.xlu0 %v233, 95
        %v341 = vpop.permute.xlu0 %340
        %vm342 = vcmask 777216
        %v343 = vsel %vm342, %v337, %v339
        %v344 = vsel %vm342, %v339, %v341
        %347 = vst [vmem:[#allocation2 + $0x30] sm:$0xf0] %v343
        %348 = vst [vmem:[#allocation2 + $0x38] sm:$0xf0] %v344
        %349 = vrot.lane.b32.xlu0 %v187, 94
        %v350 = vpop.permute.xlu0 %349
        %351 = vrot.lane.b32.xlu0 %v225, 94
        %v352 = vpop.permute.xlu0 %351
        %353 = vrot.lane.b32.xlu0 %v188, 94
        %v354 = vpop.permute.xlu0 %353
        %vm355 = vcmask 769024
        %v356 = vsel %vm355, %v350, %v352
        %v357 = vsel %vm355, %v352, %v354
        %v360 = vsel %vm249, %v356, 0.0
        %v361 = vsel %vm250, %v357, 0.0
        %362 = vst [vmem:[#allocation2 + $0x40] sm:$0xf] %v360
        %363 = vst [vmem:[#allocation2 + $0x48] sm:$0xf] %v361
        %v364 = vld [vmem:[%s1] sm:$0xff]
        %v365 = vld [vmem:[#allocation2] sm:$0xff]
        %v366 = vld [vmem:[#allocation2 + $0x8] sm:$0xff]
        %v367 = vld [vmem:[#allocation2 + $0x10] sm:$0xff]
        %v368 = vld [vmem:[#allocation2 + $0x18] sm:$0xff]
        %v369 = vld [vmem:[#allocation2 + $0x20] sm:$0xff]
        %v370 = vld [vmem:[#allocation2 + $0x28] sm:$0xff]
        %v371 = vld [vmem:[#allocation2 + $0x30] sm:$0xff]
        %v372 = vld [vmem:[#allocation2 + $0x38] sm:$0xff]
        %v373 = vld [vmem:[#allocation2 + $0x40] sm:$0xf]
        %v374 = vld [vmem:[#allocation2 + $0x48] sm:$0xf]
        %v375 = vld [vmem:[%s2] sm:$0xff]
        %377 = vset.pattern.permute.xlu0 0
        %378 = vperm.xlu0 %377, %v375
        %v379 = vpop.permute.xlu0 %378
        %vm381 = vcmask 293888
        %v383 = vsel %vm381, %v364, 0
        %vm385 = vcmask 1043456
        %v387 = vsel %vm385, %v373, 0
        %v390 = vsel %vm385, %v374, 0
        %392 = vmatprep.subr.mxu0 0.0
        %393 = vmatpush1.msra.mxu0 0.0
        %394 = vmatprep.subr.mxu0 0.0
        %395 = vmatpush1.msra.mxu0 0.0
        %396 = vmatprep.subr.mxu0 0.0
        %397 = vmatpush1.msra.mxu0 0.0
        %398 = vmatprep.subr.mxu0 0.0
        %399 = vmatpush1.msra.mxu0 0.0
        %400 = vmatprep.subr.mxu0 0.0
        %401 = vmatpush1.msra.mxu0 0.0
        %402 = vmatprep.subr.mxu0 0.0
        %403 = vmatpush1.msra.mxu0 0.0
        %404 = vmatprep.subr.mxu0 0.0
        %405 = vmatpush1.msra.mxu0 0.0
        %406 = vmatprep.subr.mxu0 0.0
        %407 = vmatpush1.msra.mxu0 0.0
        %408 = vmatprep.subr.mxu0 0.0
        %409 = vmatpush1.msra.mxu0 0.0
        %410 = vmatprep.subr.mxu0 0.0
        %411 = vmatpush1.msra.mxu0 0.0
        %412 = vmatprep.subr.mxu0 0.0
        %413 = vmatpush1.msra.mxu0 0.0
        %414 = vmatprep.subr.mxu0 %v390
        %415 = vmatpush1.msra.mxu0 %v387
        %416 = vmatprep.subr.mxu0 %v372
        %417 = vmatpush1.msra.mxu0 %v371
        %418 = vmatprep.subr.mxu0 %v370
        %419 = vmatpush1.msra.mxu0 %v369
        %420 = vmatprep.subr.mxu0 %v368
        %421 = vmatpush1.msra.mxu0 %v367
        %422 = vmatprep.subr.mxu0 %v366
        %423 = vmatpush1.msra.mxu0 %v365
        %424 = vmatprep.subr.mxu0 0.0
        %425 = vmatpush2.msra.mxu0 0.0
        %426 = vmatprep.subr.mxu0 0.0
        %427 = vmatpush2.msra.mxu0 0.0
        %428 = vmatprep.subr.mxu0 0.0
        %429 = vmatpush2.msra.mxu0 0.0
        %430 = vmatprep.subr.mxu0 0.0
        %431 = vmatpush2.msra.mxu0 0.0
        %432 = vmatprep.subr.mxu0 0.0
        %433 = vmatpush2.msra.mxu0 0.0
        %434 = vmatprep.subr.mxu0 0.0
        %435 = vmatpush2.msra.mxu0 0.0
        %436 = vmatprep.subr.mxu0 0.0
        %437 = vmatpush2.msra.mxu0 0.0
        %438 = vmatprep.subr.mxu0 0.0
        %439 = vmatpush2.msra.mxu0 0.0
        %440 = vmatprep.subr.mxu0 0.0
        %441 = vmatpush2.msra.mxu0 0.0
        %442 = vmatprep.subr.mxu0 0.0
        %443 = vmatpush2.msra.mxu0 0.0
        %444 = vmatprep.subr.mxu0 0.0
        %445 = vmatpush2.msra.mxu0 0.0
        %446 = vmatprep.subr.mxu0 0.0
        %447 = vmatpush2.msra.mxu0 0.0
        %448 = vmatprep.subr.mxu0 0.0
        %449 = vmatpush2.msra.mxu0 0.0
        %450 = vmatprep.subr.mxu0 0.0
        %451 = vmatpush2.msra.mxu0 0.0
        %452 = vmatprep.subr.mxu0 0.0
        %453 = vmatpush2.msra.mxu0 0.0
        %454 = vmatprep.subr.mxu0 0.0
        %455 = vmatpush2.msra.mxu0 0.0
        %456 = vmatprep.mubr.f32.mxu0 0.0
        %457 = vmatmul.mubr.f32.gmra.mxu0 %v383
        %v458 = vpop.f32.mrf.mxu0
        %v459 = vadd.f32 %v379, %v458
        %v460 = vpop.f32.mrf.mxu0
        %v461 = vadd.f32 %v379, %v460
        %462 = vdwg.mxu0
        %v463 = vmax.f32 %v459, 0.0
        %v464 = vmax.f32 %v461, 0.0
        %v467 = vrot.slane %v463, 4
        %v468 = vrot.slane %v464, 4
        %v471 = vadd.f32 %v463, %v467
        %v472 = vadd.f32 %v464, %v468
        %v475 = vcombine.low %v471, %v472
        %477 = vst [vmem:[%s186] sm:$0xff] %v475
        %s478 = sand.u32 %s96, 1
        %s479 = scalar_lea.sflag [#allocation5], %s478
        %s480 = sand.u32 %s96, 1
        %s481 = smul.addr %s480, 8
        %s482 = scalar_lea.vmem [#allocation6], %s481
        // Predicated region
        $region37: #{tpu_custom_call.1} parent=31 // pred_check
          %p483 = pneg %p106
        $region38: #{tpu_custom_call.1} parent=31 // pred_check_branch
          %485 = sbr.rel (%p483) target = $region40
        $region39: #{tpu_custom_call.1} parent=31 // pred_region
          %s487 = ssub.s32 128, 128
          %488 = vsyncadd %s479, %s487
          %s489 = smul.addr %s20, 2
          %s490 = smul.addr %s489, 64
          %s491 = scalar_lea.hbm %s3, %s490
          %s493 = sshll.u32 %s482, 4
          %s494 = int_to_ptr.vmem [resolvable:$true] %s493
          %496 = dma.vmem_to_hbm [thread:$0]  %s494, 128, %s491, %s479
        $region40: #{tpu_custom_call.1} parent=31 // pred_fallthru
          _
      $region32: #{tpu_custom_call.1} parent=5 // pred_fallthru
        _
      %p497 = scmp.le.s32.totalorder 2, %s15
      // Predicated region
      $region41: #{tpu_custom_call.1} parent=5 // pred_check
        %p498 = pneg %p497
      $region42: #{tpu_custom_call.1} parent=5 // pred_check_branch
        %500 = sbr.rel (%p498) target = $region44
      $region43: #{tpu_custom_call.1} parent=5 // pred_region
        %s501 = ssub.s32 %s15, 2
        // Predicated region
        $region45: #{tpu_custom_call.1} parent=43 // pred_check
          %p502 = pneg %p112
        $region46: #{tpu_custom_call.1} parent=43 // pred_check_branch
          %504 = sbr.rel (%p502) target = $region48
        $region47: #{tpu_custom_call.1} parent=43 // pred_region
          %s505 = sand.u32 %s97, 1
          %s506 = scalar_lea.sflag [#allocation5], %s505
          %s507 = sand.u32 %s97, 1
          %s508 = smul.addr %s507, 8
          %s509 = scalar_lea.vmem [#allocation6], %s508
          %510 = dma.done %s506, 128
        $region48: #{tpu_custom_call.1} parent=43 // pred_fallthru
          _
      $region44: #{tpu_custom_call.1} parent=5 // pred_fallthru
        _
    $region6: #{tpu_custom_call.1} parent=1 // loop_footer
      %s19 = sadd.s32 1, %s15
    $region7: #{tpu_custom_call.1} parent=1 // loop_footer_branch
      %14 = sbr.rel target = $region3
    $region8: #{tpu_custom_call.1} parent=1 // loop_exit
      _
    %511 = vsyncpa [#allocation4], 1
    %s512 = scalar_lea.sflag [#allocation4], 1
    %513 = vsyncpa %s512, 1
    %514 = vsyncpa [#allocation5], 1
    %s515 = scalar_lea.sflag [#allocation5], 1
    %516 = vsyncpa %s515, 1

</llo_original>
